<compile_context>
chip_gen: v7x
topology: tpu7x:2x2x1
jax: 0.10.0
libtpu: 0.0.40
codegen_flags: <defaults>
</compile_context>

<pallas_src>
import functools

import jax
import jax.numpy as jnp
from jax.experimental import pallas as pl
from jax.experimental.pallas import tpu as pltpu

TB_GRAN = 1024  # batch-tile granularity: keeps output block sublane dim % 8 == 0


def _round_up(n, m):
    return (n + m - 1) // m * m


def mixnet_kernel(xq_ref, w_ref, wb2b_ref, bout_ref, out_ref, *, n_agents,
                  hidden_dim):
    H = hidden_dim
    A = n_agents
    AH = A * H
    TB = xq_ref.shape[0]
    G = TB // 128

    # Single fused MXU matmul, f32 accumulation:
    #   [x, q, 1] @ [[W1p | 0 | Wb1 W2 Wb2a 0],
    #                [ 0  | E |       0      ],
    #                [b1p | 0 | bb1 b2 bb2a 0]]
    h = jnp.dot(xq_ref[...], w_ref[...],
                preferred_element_type=jnp.float32)        # (TB, 2*AH + 128)

    w1 = jnp.abs(h[:, 0:AH])                               # |x@W1 + b1|, agent-major
    q_exp = h[:, AH:2 * AH]                                # q broadcast to agent lanes
    z = w1 * q_exp                                         # (TB, AH)
    tail = h[:, 2 * AH:2 * AH + 128]                       # [bias1 | w2pre | h2pre | pad]

    # Repack 128 consecutive batch rows into lanes so the HBM-facing output is
    # lane-dense.  G static -> tiny unrolled loop of 128x128 f32 XLU transposes.
    rows = []
    for g in range(G):
        sl = slice(g * 128, (g + 1) * 128)
        zT = z[sl, :].T                                    # (AH, 128): batch in lanes
        tT = tail[sl, :].T                                 # (128, 128)

        acc = tT[0:H, :]                                   # bias1, sublane slice
        for a in range(A):                                 # agent sum, aligned slices
            acc = acc + zT[a * H:(a + 1) * H, :]
        y = jnp.maximum(acc, 0.0)                          # (H, 128)

        w2 = jnp.abs(tT[H:2 * H, :])
        h2 = jnp.maximum(tT[2 * H:3 * H, :], 0.0)
        r = w2 * y + h2 * wb2b_ref[...]                    # all f32, (H, 128)
        rows.append(jnp.sum(r, axis=0, keepdims=True))     # (1, 128) sublane reduce

    out_ref[...] = jnp.concatenate(rows, axis=0) + bout_ref[...]   # (G, 128)


def init_params(key, state_size, n_agents, hidden_dim):
    """Deterministic synthetic parameters, JAX [in, out] convention."""
    ks = jax.random.split(key, 5)

    def lin(k, fan_in, fan_out):
        kw, kb = jax.random.split(k)
        bound = 1.0 / jnp.sqrt(fan_in)
        w = jax.random.uniform(kw, (fan_in, fan_out), jnp.float32, -bound, bound)
        b = jax.random.uniform(kb, (fan_out,), jnp.float32, -bound, bound)
        return w, b

    p = {}
    p["w1"],   p["b1"]   = lin(ks[0], state_size, n_agents * hidden_dim)
    p["wb1"],  p["bb1"]  = lin(ks[1], state_size, hidden_dim)
    p["w2"],   p["b2"]   = lin(ks[2], state_size, hidden_dim)
    p["wb2a"], p["bb2a"] = lin(ks[3], state_size, hidden_dim)
    p["wb2b"], p["bb2b"] = lin(ks[4], hidden_dim, 1)
    return p


def pack_params(params, n_agents, hidden_dim):
    """One-time packing (hoisted out of the per-call forward path)."""
    S = params["w1"].shape[0]
    H, A = hidden_dim, n_agents
    AH = A * H
    assert AH % 128 == 0, "agent-major width must be lane-aligned"
    assert 3 * H <= 128 and H % 8 == 0
    K = S + A + 1
    Kp = _round_up(K, 8)
    NCOL = 2 * AH + 128

    # torch flat column h*A + a  ->  agent-major column a*H + h
    W1p = params["w1"].reshape(S, H, A).transpose(0, 2, 1).reshape(S, AH)
    b1p = params["b1"].reshape(H, A).T.reshape(AH)

    w = jnp.zeros((Kp, NCOL), jnp.float32)
    # state rows
    w = w.at[:S, 0:AH].set(W1p)
    w = w.at[:S, 2 * AH + 0 * H:2 * AH + 1 * H].set(params["wb1"])
    w = w.at[:S, 2 * AH + 1 * H:2 * AH + 2 * H].set(params["w2"])
    w = w.at[:S, 2 * AH + 2 * H:2 * AH + 3 * H].set(params["wb2a"])
    # q rows: broadcast q to agent-major lanes (exact 0/1 in bf16)
    e = jnp.repeat(jnp.eye(A, dtype=jnp.float32), H, axis=1)        # (A, AH)
    w = w.at[S:S + A, AH:2 * AH].set(e)
    # constant-1 row: all hyper-net biases
    w = w.at[S + A, 0:AH].set(b1p)
    w = w.at[S + A, 2 * AH + 0 * H:2 * AH + 1 * H].set(params["bb1"])
    w = w.at[S + A, 2 * AH + 1 * H:2 * AH + 2 * H].set(params["b2"])
    w = w.at[S + A, 2 * AH + 2 * H:2 * AH + 3 * H].set(params["bb2a"])

    wb2b = jnp.broadcast_to(params["wb2b"], (H, 128)).astype(jnp.float32)
    bout = jnp.full((1, 128), params["bb2b"][0], jnp.float32)

    return {"w": w.astype(jnp.bfloat16), "wb2b": wb2b, "bout": bout}


def mixnet_forward(q_values, observations, hidden, packed, n_agents, hidden_dim,
                   *, block_b=1024):
    B, A, O = observations.shape
    assert A == n_agents
    S = A * O
    H = hidden_dim
    AH = A * H
    K = S + A + 1
    Kp = _round_up(K, 8)
    NCOL = 2 * AH + 128

    # Fused input [state, q, 1]; the constant-1 column carries every bias.
    x = observations.reshape(B, S)
    xq = jnp.concatenate([x, q_values, jnp.ones((B, 1), x.dtype)],
                         axis=1).astype(jnp.bfloat16)

    # Batch tiling.  Small batches run as one full-array block; larger batches
    # use TB multiples of 1024 so the (TB//128, 128) output block stays
    # (8,128)-aligned and multi-step grids shard across v7x's 2 TensorCores.
    Bp128 = _round_up(B, 128)
    if Bp128 <= TB_GRAN:
        TB = Bp128
    else:
        TB = max(TB_GRAN, (min(block_b, Bp128) // TB_GRAN) * TB_GRAN)
    Bp = _round_up(B, TB)
    xq = jnp.pad(xq, ((0, Bp - B), (0, Kp - K)))

    kernel = functools.partial(mixnet_kernel, n_agents=A, hidden_dim=H)
    cost = pl.CostEstimate(
        flops=2 * Bp * Kp * NCOL,
        transcendentals=0,
        bytes_accessed=Bp * Kp * 2 + Kp * NCOL * 2 + H * 128 * 4 + Bp * 4)

    out = pl.pallas_call(
        kernel,
        out_shape=jax.ShapeDtypeStruct((Bp // 128, 128), jnp.float32),
        grid=(Bp // TB,),
        in_specs=[
            pl.BlockSpec((TB, Kp), lambda i: (i, 0)),      # fused [x, q, 1] (batch-tiled)
            pl.BlockSpec((Kp, NCOL), lambda i: (0, 0)),    # fused hyper weights (resident)
            pl.BlockSpec((H, 128), lambda i: (0, 0)),      # wb2b rows (resident)
            pl.BlockSpec((1, 128), lambda i: (0, 0)),      # bb2b row (resident)
        ],
        out_specs=pl.BlockSpec((TB // 128, 128), lambda i: (i, 0)),
        compiler_params=pltpu.CompilerParams(
            dimension_semantics=("parallel",),
            vmem_limit_bytes=32 * 1024 * 1024),
        cost_estimate=cost,
    )(xq, packed["w"], packed["wb2b"], packed["bout"])

    q_tot = out.reshape(Bp, 1)[:B]
    # TODO(synk): recurrent GRUCell path not implemented; hidden passed through.
    return q_tot, hidden


def mixnet_reference(q_values, observations, hidden, params, hidden_dim):
    """Pure-JAX (f32) mirror of the PyTorch forward (for verification)."""
    B, A, O = observations.shape
    x = observations.reshape(B, A * O)
    w1 = jnp.abs(x @ params["w1"] + params["b1"]).reshape(B, hidden_dim, A)
    bias1 = (x @ params["wb1"] + params["bb1"])[:, :, None]
    w2 = jnp.abs(x @ params["w2"] + params["b2"])
    h2 = jnp.maximum(x @ params["wb2a"] + params["bb2a"], 0.0)
    bias2 = h2 @ params["wb2b"] + params["bb2b"]
    y = jnp.einsum("bha,ba->bh", w1, q_values)[:, :, None] + bias1
    y = jnp.maximum(y, 0.0)
    out = jnp.sum(w2[:, :, None] * y, axis=1) + bias2
    return out, hidden


if __name__ == "__main__":
    n_agents, obs_size = 4, 8
    hidden_dim, hx_size = 32, 64
    state_size = n_agents * obs_size

    key = jax.random.PRNGKey(0)
    k_par, k_obs, k_q, k_obs2, k_q2 = jax.random.split(key, 5)
    params = init_params(k_par, state_size, n_agents, hidden_dim)
    packed = pack_params(params, n_agents, hidden_dim)   # hoisted, done once

    # Small case (B = 2): single grid step, full-array blocks.
    B = 2
    observations = jax.random.normal(k_obs, (B, n_agents, obs_size), jnp.float32)
    q_values = jax.random.normal(k_q, (B, n_agents), jnp.float32)
    hidden = jnp.zeros((B, hx_size), jnp.float32)        # init_hidden equivalent

    out, hidden_out = mixnet_forward(q_values, observations, hidden, packed,
                                     n_agents, hidden_dim)
    out = jax.block_until_ready(out)
    ref, _ = mixnet_reference(q_values, observations, hidden, params, hidden_dim)
    assert out.shape == (B, 1) and hidden_out.shape == (B, hx_size)
    # bf16 inputs/weights with f32 accumulation -> relaxed tolerance vs f32 ref.
    assert jnp.allclose(out, ref, atol=1e-1, rtol=3e-2), (out, ref)

    # Larger, non-divisible batch: exercises padding + multi-step parallel grid.
    B2 = 3000
    observations2 = jax.random.normal(k_obs2, (B2, n_agents, obs_size), jnp.float32)
    q_values2 = jax.random.normal(k_q2, (B2, n_agents), jnp.float32)
    hidden2 = jnp.zeros((B2, hx_size), jnp.float32)
    out2, _ = mixnet_forward(q_values2, observations2, hidden2, packed,
                             n_agents, hidden_dim, block_b=1024)
    out2 = jax.block_until_ready(out2)
    ref2, _ = mixnet_reference(q_values2, observations2, hidden2, params,
                               hidden_dim)
    assert out2.shape == (B2, 1)
    assert jnp.allclose(out2, ref2, atol=1e-1, rtol=3e-2)

    print("KERNEL_OK")
</pallas_src>

<mosaic_0001>
module attributes {stable_mosaic.version = 11 : i64} {
  func.func @mixnet_kernel(%arg0: i32, %arg1: memref<128x40xbf16, #tpu.memory_space<vmem>>, %arg2: memref<40x384xbf16, #tpu.memory_space<vmem>>, %arg3: memref<32x128xf32, #tpu.memory_space<vmem>>, %arg4: memref<1x128xf32, #tpu.memory_space<vmem>>, %arg5: memref<1x128xf32, #tpu.memory_space<vmem>>) attributes {dimension_semantics = [#tpu.dimension_semantics<parallel>], iteration_bounds = array<i64: 1>, scalar_prefetch = 0 : i64, scratch_operands = 0 : i64, tpu.core_type = #tpu.core_type<tc>, window_params = [{transform_indices = @transform_0, window_bounds = array<i64: 128, 40>}, {pipeline_mode = #tpu.pipeline_mode<synchronous>, transform_indices = @transform_1, window_bounds = array<i64: 40, 384>}, {pipeline_mode = #tpu.pipeline_mode<synchronous>, transform_indices = @transform_2, window_bounds = array<i64: 32, 128>}, {pipeline_mode = #tpu.pipeline_mode<synchronous>, transform_indices = @transform_3, window_bounds = array<i64: 1, 128>}, {transform_indices = @transform_4, window_bounds = array<i64: 1, 128>}]} {
    %c0 = arith.constant 0 : index
    %c0_0 = arith.constant 0 : index
    %0 = vector.load %arg1[%c0, %c0_0] : memref<128x40xbf16, #tpu.memory_space<vmem>>, vector<128x40xbf16>
    %c0_1 = arith.constant 0 : index
    %c0_2 = arith.constant 0 : index
    %1 = vector.load %arg2[%c0_1, %c0_2] : memref<40x384xbf16, #tpu.memory_space<vmem>>, vector<40x384xbf16>
    %cst = arith.constant dense<0.000000e+00> : vector<128x384xf32>
    %2 = tpu.matmul %0, %1, %cst {dimension_numbers = #tpu.dot_dimension_numbers<[1], [0], [0], [1], [0, 0, 1, 1], [], []>} : vector<128x40xbf16>, vector<40x384xbf16>, vector<128x384xf32> -> vector<128x384xf32>
    %3 = vector.extract_strided_slice %2 {offsets = [0, 0], sizes = [128, 128], strides = [1, 1]} : vector<128x384xf32> to vector<128x128xf32>
    %4 = math.absf %3 : vector<128x128xf32>
    %5 = vector.extract_strided_slice %2 {offsets = [0, 128], sizes = [128, 128], strides = [1, 1]} : vector<128x384xf32> to vector<128x128xf32>
    %6 = arith.mulf %4, %5 : vector<128x128xf32>
    %7 = vector.extract_strided_slice %2 {offsets = [0, 256], sizes = [128, 128], strides = [1, 1]} : vector<128x384xf32> to vector<128x128xf32>
    %8 = tpu.transpose %6, [1, 0] : vector<128x128xf32> -> vector<128x128xf32>
    %9 = tpu.transpose %7, [1, 0] : vector<128x128xf32> -> vector<128x128xf32>
    %10 = vector.extract_strided_slice %9 {offsets = [0, 0], sizes = [32, 128], strides = [1, 1]} : vector<128x128xf32> to vector<32x128xf32>
    %11 = vector.extract_strided_slice %8 {offsets = [0, 0], sizes = [32, 128], strides = [1, 1]} : vector<128x128xf32> to vector<32x128xf32>
    %12 = arith.addf %10, %11 : vector<32x128xf32>
    %13 = vector.extract_strided_slice %8 {offsets = [32, 0], sizes = [32, 128], strides = [1, 1]} : vector<128x128xf32> to vector<32x128xf32>
    %14 = arith.addf %12, %13 : vector<32x128xf32>
    %15 = vector.extract_strided_slice %8 {offsets = [64, 0], sizes = [32, 128], strides = [1, 1]} : vector<128x128xf32> to vector<32x128xf32>
    %16 = arith.addf %14, %15 : vector<32x128xf32>
    %17 = vector.extract_strided_slice %8 {offsets = [96, 0], sizes = [32, 128], strides = [1, 1]} : vector<128x128xf32> to vector<32x128xf32>
    %18 = arith.addf %16, %17 : vector<32x128xf32>
    %cst_3 = arith.constant 0.000000e+00 : f32
    %19 = vector.broadcast %cst_3 : f32 to vector<32x128xf32>
    %20 = arith.maximumf %18, %19 : vector<32x128xf32>
    %21 = vector.extract_strided_slice %9 {offsets = [32, 0], sizes = [32, 128], strides = [1, 1]} : vector<128x128xf32> to vector<32x128xf32>
    %22 = math.absf %21 : vector<32x128xf32>
    %23 = vector.extract_strided_slice %9 {offsets = [64, 0], sizes = [32, 128], strides = [1, 1]} : vector<128x128xf32> to vector<32x128xf32>
    %cst_4 = arith.constant 0.000000e+00 : f32
    %24 = vector.broadcast %cst_4 : f32 to vector<32x128xf32>
    %25 = arith.maximumf %23, %24 : vector<32x128xf32>
    %26 = arith.mulf %22, %20 : vector<32x128xf32>
    %c0_5 = arith.constant 0 : index
    %c0_6 = arith.constant 0 : index
    %27 = vector.load %arg3[%c0_5, %c0_6] : memref<32x128xf32, #tpu.memory_space<vmem>>, vector<32x128xf32>
    %28 = arith.mulf %25, %27 : vector<32x128xf32>
    %29 = arith.addf %26, %28 : vector<32x128xf32>
    %cst_7 = arith.constant dense<0.000000e+00> : vector<128xf32>
    %30 = vector.multi_reduction <add>, %29, %cst_7 [0] : vector<32x128xf32> to vector<128xf32>
    %31 = vector.shape_cast %30 : vector<128xf32> to vector<1x128xf32>
    %c0_8 = arith.constant 0 : index
    %c0_9 = arith.constant 0 : index
    %32 = vector.load %arg4[%c0_8, %c0_9] : memref<1x128xf32, #tpu.memory_space<vmem>>, vector<1x128xf32>
    %33 = arith.addf %31, %32 : vector<1x128xf32>
    %c0_10 = arith.constant 0 : index
    %c0_11 = arith.constant 0 : index
    %34 = vector.load %arg5[%c0_10, %c0_11] : memref<1x128xf32, #tpu.memory_space<vmem>>, vector<1x128xf32>
    tpu.vector_store %arg5[%c0_10, %c0_11], %33 {strides = array<i32>} : memref<1x128xf32, #tpu.memory_space<vmem>>, vector<1x128xf32>,
    return
  }
  func.func @transform_0(%arg0: i32) -> (i32, i32) {
    %c0_i32 = arith.constant 0 : i32
    %c0_i32_0 = arith.constant 0 : i32
    return %arg0, %c0_i32 : i32, i32
  }
  func.func @transform_1(%arg0: i32) -> (i32, i32) {
    %c0_i32 = arith.constant 0 : i32
    %c0_i32_0 = arith.constant 0 : i32
    %c0_i32_1 = arith.constant 0 : i32
    return %c0_i32, %c0_i32_0 : i32, i32
  }
  func.func @transform_2(%arg0: i32) -> (i32, i32) {
    %c0_i32 = arith.constant 0 : i32
    %c0_i32_0 = arith.constant 0 : i32
    %c0_i32_1 = arith.constant 0 : i32
    return %c0_i32, %c0_i32_0 : i32, i32
  }
  func.func @transform_3(%arg0: i32) -> (i32, i32) {
    %c0_i32 = arith.constant 0 : i32
    %c0_i32_0 = arith.constant 0 : i32
    %c0_i32_1 = arith.constant 0 : i32
    return %c0_i32, %c0_i32_0 : i32, i32
  }
  func.func @transform_4(%arg0: i32) -> (i32, i32) {
    %c0_i32 = arith.constant 0 : i32
    %c0_i32_0 = arith.constant 0 : i32
    return %arg0, %c0_i32 : i32, i32
  }
}

</mosaic_0001>

<llo_original>
// kernel: tpu_custom_call.1
$region0: #{tpu_custom_call.1}
  #allocation0 [shape = 'u32[]', space=smem, size = 0x4, offset = 0x4, fixed_abs, tag = 'smem constant byte address 0x4 - core index']
  #allocation1 [shape = 'u32[144,128]{1,0:T(1,128)}', space=vmem, size = 0x12000, scoped, tag = 'internal scratch']
  %s0 = inlined_call_operand.vmem [shape: bf16[128,40], index: 0, kind: input, shape index: {}]
  %s1 = inlined_call_operand.vmem [shape: bf16[40,384], index: 1, kind: input, shape index: {}]
  %s2 = inlined_call_operand.hbm [shape: f32[32,128], index: 2, kind: input, shape index: {}]
  %s3 = inlined_call_operand.vmem [shape: f32[1,128], index: 3, kind: input, shape index: {}]
  %s4 = inlined_call_operand.hbm [shape: f32[1,128], index: 4, kind: output, shape index: {}]
  %s5 = sld [smem:[#allocation0]]
  $region30: #{tpu_custom_call.1} parent=0
    _
  %s7 = ssub.s32 1, %s5
  %s8 = scalar_select 0, %s7, %s5
  $region1: #{tpu_custom_call.1} parent=0
    #allocation2 [shape = 'u8[16384]{0}', space=vmem, size = 0x4000, scoped, tag = 'input window, operand 2, single buffered']
    #allocation3 [shape = 's32[1]{0}', space=sflag, size = 0x4, scoped, tag = 'scoped memory for tpu_custom_call.1']
    #allocation4 [shape = 's32[1]{0}', space=sflag, size = 0x4, scoped, tag = 'scoped memory for tpu_custom_call.1']
    #allocation5 [shape = 'u8[512]{0}', space=vmem, size = 0x400, scoped, tag = 'output window, operand 0, single buffered']
    %9 = vsyncpa [#allocation3], 0
    %10 = vsyncpa [#allocation4], 0
    // Predicated region
    $region2: #{tpu_custom_call.1} parent=1 // pred_check
      _
    $region3: #{tpu_custom_call.1} parent=1 // pred_check_branch
      %12 = sbr.rel (0) target = $region5
    $region4: #{tpu_custom_call.1} parent=1 // pred_region
      _
    $region5: #{tpu_custom_call.1} parent=1 // pred_fallthru
      _
    // Predicated region
    $region6: #{tpu_custom_call.1} parent=1 // pred_check
      _
    $region7: #{tpu_custom_call.1} parent=1 // pred_check_branch
      %14 = sbr.rel (0) target = $region9
    $region8: #{tpu_custom_call.1} parent=1 // pred_region
      _
    $region9: #{tpu_custom_call.1} parent=1 // pred_fallthru
      _
    // Predicated region
    $region10: #{tpu_custom_call.1} parent=1 // pred_check
      _
    $region11: #{tpu_custom_call.1} parent=1 // pred_check_branch
      %16 = sbr.rel (0) target = $region13
    $region12: #{tpu_custom_call.1} parent=1 // pred_region
      %s18 = ssub.s32 512, 512
      %19 = vsyncadd [#allocation3], %s18
      %s20 = sshll.u32 [#allocation2], 4
      %s21 = int_to_ptr.vmem [resolvable:$true] %s20
      %26 = dma.hbm_to_vmem [thread:$0]  %s2, 512, %s21, [#allocation3], 128, 128, 8
    $region13: #{tpu_custom_call.1} parent=1 // pred_fallthru
      _
    // Predicated region
    $region14: #{tpu_custom_call.1} parent=1 // pred_check
      _
    $region15: #{tpu_custom_call.1} parent=1 // pred_check_branch
      %28 = sbr.rel (0) target = $region17
    $region16: #{tpu_custom_call.1} parent=1 // pred_region
      _
    $region17: #{tpu_custom_call.1} parent=1 // pred_fallthru
      _
    // Predicated region
    $region18: #{tpu_custom_call.1} parent=1 // pred_check
      _
    $region19: #{tpu_custom_call.1} parent=1 // pred_check_branch
      %30 = sbr.rel (0) target = $region21
    $region20: #{tpu_custom_call.1} parent=1 // pred_region
      %31 = dma.done [#allocation3], 512
    $region21: #{tpu_custom_call.1} parent=1 // pred_fallthru
      _
    %v33 = vld [vmem:[%s0] sm:$0xf]
    %v34 = vld [vmem:[%s0 + $0x4] sm:$0xf]
    %v35 = vld [vmem:[%s0 + $0x8] sm:$0xf]
    %v36 = vld [vmem:[%s0 + $0xc] sm:$0xf]
    %v37 = vld [vmem:[%s0 + $0x10] sm:$0xf]
    %v38 = vld [vmem:[%s0 + $0x14] sm:$0xf]
    %v39 = vld [vmem:[%s0 + $0x18] sm:$0xf]
    %v40 = vld [vmem:[%s0 + $0x1c] sm:$0xf]
    %v41 = vld [vmem:[%s0 + $0x20] sm:$0xf]
    %v42 = vld [vmem:[%s0 + $0x24] sm:$0xf]
    %v43 = vld [vmem:[%s0 + $0x28] sm:$0xf]
    %v44 = vld [vmem:[%s0 + $0x2c] sm:$0xf]
    %v45 = vld [vmem:[%s0 + $0x30] sm:$0xf]
    %v46 = vld [vmem:[%s0 + $0x34] sm:$0xf]
    %v47 = vld [vmem:[%s0 + $0x38] sm:$0xf]
    %v48 = vld [vmem:[%s0 + $0x3c] sm:$0xf]
    %v49 = vld [vmem:[%s1] sm:$0xff]
    %v50 = vld [vmem:[%s1 + $0x8] sm:$0xf]
    %v51 = vld [vmem:[%s1 + $0xc] sm:$0xff]
    %v52 = vld [vmem:[%s1 + $0x14] sm:$0xf]
    %v53 = vld [vmem:[%s1 + $0x18] sm:$0xff]
    %v54 = vld [vmem:[%s1 + $0x20] sm:$0xf]
    %v55 = vld [vmem:[%s1 + $0x24] sm:$0xff]
    %v56 = vld [vmem:[%s1 + $0x2c] sm:$0xf]
    %v57 = vld [vmem:[%s1 + $0x30] sm:$0xff]
    %v58 = vld [vmem:[%s1 + $0x38] sm:$0xf]
    %v75 = vunpack.c.l.b16 %v33
    %v76 = vunpack.c.l.b16 %v34
    %v77 = vunpack.c.l.b16 %v35
    %v78 = vunpack.c.l.b16 %v36
    %v79 = vunpack.c.l.b16 %v37
    %v80 = vunpack.c.l.b16 %v38
    %v81 = vunpack.c.l.b16 %v39
    %v82 = vunpack.c.l.b16 %v40
    %v83 = vunpack.c.l.b16 %v41
    %v84 = vunpack.c.l.b16 %v42
    %v85 = vunpack.c.l.b16 %v43
    %v86 = vunpack.c.l.b16 %v44
    %v87 = vunpack.c.l.b16 %v45
    %v88 = vunpack.c.l.b16 %v46
    %v89 = vunpack.c.l.b16 %v47
    %v90 = vunpack.c.l.b16 %v48
    %v91 = vpack.c.b16 %v76, %v75
    %v92 = vpack.c.b16 %v78, %v77
    %v93 = vpack.c.b16 %v80, %v79
    %v94 = vpack.c.b16 %v82, %v81
    %v95 = vpack.c.b16 %v84, %v83
    %v96 = vpack.c.b16 %v86, %v85
    %v97 = vpack.c.b16 %v88, %v87
    %v98 = vpack.c.b16 %v90, %v89
    %v109 = vunpack.c.l.b16 %v49
    %v110 = vunpack.c.h.b16 %v49
    %v111 = vunpack.c.l.b16 %v50
    %v112 = vunpack.c.l.b16 %v51
    %v113 = vunpack.c.h.b16 %v51
    %v114 = vunpack.c.l.b16 %v52
    %v115 = vunpack.c.l.b16 %v53
    %v116 = vunpack.c.h.b16 %v53
    %v117 = vunpack.c.l.b16 %v54
    %v118 = vunpack.c.l.b16 %v55
    %v119 = vunpack.c.h.b16 %v55
    %v120 = vunpack.c.l.b16 %v56
    %v121 = vunpack.c.l.b16 %v57
    %v122 = vunpack.c.h.b16 %v57
    %v123 = vunpack.c.l.b16 %v58
    %v124 = vpack.c.b16 %v112, %v109
    %v125 = vpack.c.b16 %v113, %v110
    %v126 = vpack.c.b16 %v114, %v111
    %v127 = vpack.c.b16 %v118, %v115
    %v128 = vpack.c.b16 %v119, %v116
    %v129 = vpack.c.b16 %v120, %v117
    %v130 = vpack.c.b16 %v121, %v121
    %v131 = vpack.c.b16 %v122, %v122
    %v132 = vpack.c.b16 %v123, %v123
    %vm139 = vcmask 326656
    %v141 = vsel %vm139, %v91, 0
    %v144 = vsel %vm139, %v92, 0
    %v147 = vsel %vm139, %v93, 0
    %v150 = vsel %vm139, %v94, 0
    %v153 = vsel %vm139, %v95, 0
    %v156 = vsel %vm139, %v96, 0
    %v159 = vsel %vm139, %v97, 0
    %v162 = vsel %vm139, %v98, 0
    %vm164 = vcmask 1043456
    %v166 = vsel %vm164, %v130, 0
    %v169 = vsel %vm164, %v131, 0
    %v172 = vsel %vm164, %v132, 0
    %174 = vmatprep.subr.bf16.mxu0 %v125
    %175 = vmatpush1.bf16.msra.mxu0 %v124
    %176 = vmatprep.subr.bf16.mxu0 %v128
    %177 = vmatpush1.bf16.msra.mxu0 %v127
    %178 = vmatprep.subr.bf16.mxu0 %v169
    %179 = vmatpush1.bf16.msra.mxu0 %v166
    %180 = vmatprep.subr.bf16.mxu0 0
    %181 = vmatpush1.bf16.msra.mxu0 0
    %182 = vmatprep.subr.bf16.mxu0 0
    %183 = vmatpush1.bf16.msra.mxu0 0
    %184 = vmatprep.subr.bf16.mxu0 0
    %185 = vmatpush1.bf16.msra.mxu0 0
    %186 = vmatprep.subr.bf16.mxu0 0
    %187 = vmatpush1.bf16.msra.mxu0 0
    %188 = vmatprep.subr.bf16.mxu0 0
    %189 = vmatpush1.bf16.msra.mxu0 0
    %190 = vmatprep.subr.bf16.mxu0 0
    %191 = vmatpush1.bf16.msra.mxu0 0
    %192 = vmatprep.subr.bf16.mxu0 0
    %193 = vmatpush1.bf16.msra.mxu0 0
    %194 = vmatprep.subr.bf16.mxu0 0
    %195 = vmatpush1.bf16.msra.mxu0 0
    %196 = vmatprep.subr.bf16.mxu0 0
    %197 = vmatpush1.bf16.msra.mxu0 0
    %198 = vmatprep.subr.bf16.mxu0 0
    %199 = vmatpush1.bf16.msra.mxu0 0
    %200 = vmatprep.subr.bf16.mxu0 0
    %201 = vmatpush1.bf16.msra.mxu0 0
    %202 = vmatprep.subr.bf16.mxu0 0
    %203 = vmatpush1.bf16.msra.mxu0 0
    %204 = vmatprep.subr.bf16.mxu0 0
    %205 = vmatpush1.bf16.msra.mxu0 0
    %206 = vmatprep.mubr.bf16.mxu0 0
    %207 = vmatmul.mubr.bf16.gmra.mrb[0].mxu0 %v141
    %v208 = vpop.f32.mrb[0].mxu0
    %v209 = vadd.f32 0.0, %v208
    %v210 = vpop.f32.mrb[0].mxu0
    %v211 = vadd.f32 0.0, %v210
    %v212 = vpop.f32.mrb[0].mxu0
    %v213 = vadd.f32 0.0, %v212
    %v214 = vpop.f32.mrb[0].mxu0
    %v215 = vadd.f32 0.0, %v214
    %216 = vmatprep.mubr.bf16.mxu0 0
    %217 = vmatmul.mubr.bf16.gmra.mrb[0].mxu0 %v144
    %v218 = vpop.f32.mrb[0].mxu0
    %v219 = vadd.f32 0.0, %v218
    %v220 = vpop.f32.mrb[0].mxu0
    %v221 = vadd.f32 0.0, %v220
    %v222 = vpop.f32.mrb[0].mxu0
    %v223 = vadd.f32 0.0, %v222
    %v224 = vpop.f32.mrb[0].mxu0
    %v225 = vadd.f32 0.0, %v224
    %226 = vmatprep.mubr.bf16.mxu0 0
    %227 = vmatmul.mubr.bf16.gmra.mrb[0].mxu0 %v147
    %v228 = vpop.f32.mrb[0].mxu0
    %v229 = vadd.f32 0.0, %v228
    %v230 = vpop.f32.mrb[0].mxu0
    %v231 = vadd.f32 0.0, %v230
    %v232 = vpop.f32.mrb[0].mxu0
    %v233 = vadd.f32 0.0, %v232
    %v234 = vpop.f32.mrb[0].mxu0
    %v235 = vadd.f32 0.0, %v234
    %236 = vmatprep.mubr.bf16.mxu0 0
    %237 = vmatmul.mubr.bf16.gmra.mrb[0].mxu0 %v150
    %v238 = vpop.f32.mrb[0].mxu0
    %v239 = vadd.f32 0.0, %v238
    %v240 = vpop.f32.mrb[0].mxu0
    %v241 = vadd.f32 0.0, %v240
    %v242 = vpop.f32.mrb[0].mxu0
    %v243 = vadd.f32 0.0, %v242
    %v244 = vpop.f32.mrb[0].mxu0
    %v245 = vadd.f32 0.0, %v244
    %246 = vmatprep.mubr.bf16.mxu0 0
    %247 = vmatmul.mubr.bf16.gmra.mrb[0].mxu0 %v153
    %v248 = vpop.f32.mrb[0].mxu0
    %v249 = vadd.f32 0.0, %v248
    %v250 = vpop.f32.mrb[0].mxu0
    %v251 = vadd.f32 0.0, %v250
    %v252 = vpop.f32.mrb[0].mxu0
    %v253 = vadd.f32 0.0, %v252
    %v254 = vpop.f32.mrb[0].mxu0
    %v255 = vadd.f32 0.0, %v254
    %256 = vmatprep.mubr.bf16.mxu0 0
    %257 = vmatmul.mubr.bf16.gmra.mrb[0].mxu0 %v156
    %v258 = vpop.f32.mrb[0].mxu0
    %v259 = vadd.f32 0.0, %v258
    %v260 = vpop.f32.mrb[0].mxu0
    %v261 = vadd.f32 0.0, %v260
    %v262 = vpop.f32.mrb[0].mxu0
    %v263 = vadd.f32 0.0, %v262
    %v264 = vpop.f32.mrb[0].mxu0
    %v265 = vadd.f32 0.0, %v264
    %266 = vmatprep.mubr.bf16.mxu0 0
    %267 = vmatmul.mubr.bf16.gmra.mrb[0].mxu0 %v159
    %v268 = vpop.f32.mrb[0].mxu0
    %v269 = vadd.f32 0.0, %v268
    %v270 = vpop.f32.mrb[0].mxu0
    %v271 = vadd.f32 0.0, %v270
    %v272 = vpop.f32.mrb[0].mxu0
    %v273 = vadd.f32 0.0, %v272
    %v274 = vpop.f32.mrb[0].mxu0
    %v275 = vadd.f32 0.0, %v274
    %276 = vmatprep.mubr.bf16.mxu0 0
    %277 = vmatmul.mubr.bf16.gmra.mrb[0].mxu0 %v162
    %v278 = vpop.f32.mrb[0].mxu0
    %v279 = vadd.f32 0.0, %v278
    %v280 = vpop.f32.mrb[0].mxu0
    %v281 = vadd.f32 0.0, %v280
    %v282 = vpop.f32.mrb[0].mxu0
    %v283 = vadd.f32 0.0, %v282
    %v284 = vpop.f32.mrb[0].mxu0
    %v285 = vadd.f32 0.0, %v284
    %286 = vdwg.mxu0
    %287 = vmatprep.subr.bf16.mxu0 0
    %288 = vmatpush1.bf16.msra.mxu0 %v126
    %289 = vmatprep.subr.bf16.mxu0 0
    %290 = vmatpush1.bf16.msra.mxu0 %v129
    %291 = vmatprep.subr.bf16.mxu0 0
    %292 = vmatpush1.bf16.msra.mxu0 %v172
    %293 = vmatprep.subr.bf16.mxu0 0
    %294 = vmatpush1.bf16.msra.mxu0 0
    %295 = vmatprep.subr.bf16.mxu0 0
    %296 = vmatpush1.bf16.msra.mxu0 0
    %297 = vmatprep.subr.bf16.mxu0 0
    %298 = vmatpush1.bf16.msra.mxu0 0
    %299 = vmatprep.subr.bf16.mxu0 0
    %300 = vmatpush1.bf16.msra.mxu0 0
    %301 = vmatprep.subr.bf16.mxu0 0
    %302 = vmatpush1.bf16.msra.mxu0 0
    %303 = vmatprep.subr.bf16.mxu0 0
    %304 = vmatpush1.bf16.msra.mxu0 0
    %305 = vmatprep.subr.bf16.mxu0 0
    %306 = vmatpush1.bf16.msra.mxu0 0
    %307 = vmatprep.subr.bf16.mxu0 0
    %308 = vmatpush1.bf16.msra.mxu0 0
    %309 = vmatprep.subr.bf16.mxu0 0
    %310 = vmatpush1.bf16.msra.mxu0 0
    %311 = vmatprep.subr.bf16.mxu0 0
    %312 = vmatpush1.bf16.msra.mxu0 0
    %313 = vmatprep.subr.bf16.mxu0 0
    %314 = vmatpush1.bf16.msra.mxu0 0
    %315 = vmatprep.subr.bf16.mxu0 0
    %316 = vmatpush1.bf16.msra.mxu0 0
    %317 = vmatprep.subr.bf16.mxu0 0
    %318 = vmatpush1.bf16.msra.mxu0 0
    %319 = vmatprep.mubr.bf16.mxu0 0
    %320 = vmatmul.mubr.bf16.gmra.mrb[0].mxu0 %v141
    %v321 = vpop.f32.mrb[0].mxu0
    %v322 = vadd.f32 0.0, %v321
    %v323 = vpop.f32.mrb[0].mxu0
    %v324 = vpop.f32.mrb[0].mxu0
    %v325 = vadd.f32 0.0, %v324
    %v326 = vpop.f32.mrb[0].mxu0
    %327 = vmatprep.mubr.bf16.mxu0 0
    %328 = vmatmul.mubr.bf16.gmra.mrb[0].mxu0 %v144
    %v329 = vpop.f32.mrb[0].mxu0
    %v330 = vadd.f32 0.0, %v329
    %v331 = vpop.f32.mrb[0].mxu0
    %v332 = vpop.f32.mrb[0].mxu0
    %v333 = vadd.f32 0.0, %v332
    %v334 = vpop.f32.mrb[0].mxu0
    %335 = vmatprep.mubr.bf16.mxu0 0
    %336 = vmatmul.mubr.bf16.gmra.mrb[0].mxu0 %v147
    %v337 = vpop.f32.mrb[0].mxu0
    %v338 = vadd.f32 0.0, %v337
    %v339 = vpop.f32.mrb[0].mxu0
    %v340 = vpop.f32.mrb[0].mxu0
    %v341 = vadd.f32 0.0, %v340
    %v342 = vpop.f32.mrb[0].mxu0
    %343 = vmatprep.mubr.bf16.mxu0 0
    %344 = vmatmul.mubr.bf16.gmra.mrb[0].mxu0 %v150
    %v345 = vpop.f32.mrb[0].mxu0
    %v346 = vadd.f32 0.0, %v345
    %v347 = vpop.f32.mrb[0].mxu0
    %v348 = vpop.f32.mrb[0].mxu0
    %v349 = vadd.f32 0.0, %v348
    %v350 = vpop.f32.mrb[0].mxu0
    %351 = vmatprep.mubr.bf16.mxu0 0
    %352 = vmatmul.mubr.bf16.gmra.mrb[0].mxu0 %v153
    %v353 = vpop.f32.mrb[0].mxu0
    %v354 = vadd.f32 0.0, %v353
    %v355 = vpop.f32.mrb[0].mxu0
    %v356 = vpop.f32.mrb[0].mxu0
    %v357 = vadd.f32 0.0, %v356
    %v358 = vpop.f32.mrb[0].mxu0
    %359 = vmatprep.mubr.bf16.mxu0 0
    %360 = vmatmul.mubr.bf16.gmra.mrb[0].mxu0 %v156
    %v361 = vpop.f32.mrb[0].mxu0
    %v362 = vadd.f32 0.0, %v361
    %v363 = vpop.f32.mrb[0].mxu0
    %v364 = vpop.f32.mrb[0].mxu0
    %v365 = vadd.f32 0.0, %v364
    %v366 = vpop.f32.mrb[0].mxu0
    %367 = vmatprep.mubr.bf16.mxu0 0
    %368 = vmatmul.mubr.bf16.gmra.mrb[0].mxu0 %v159
    %v369 = vpop.f32.mrb[0].mxu0
    %v370 = vadd.f32 0.0, %v369
    %v371 = vpop.f32.mrb[0].mxu0
    %v372 = vpop.f32.mrb[0].mxu0
    %v373 = vadd.f32 0.0, %v372
    %v374 = vpop.f32.mrb[0].mxu0
    %375 = vmatprep.mubr.bf16.mxu0 0
    %376 = vmatmul.mubr.bf16.gmra.mrb[0].mxu0 %v162
    %v377 = vpop.f32.mrb[0].mxu0
    %v378 = vadd.f32 0.0, %v377
    %v379 = vpop.f32.mrb[0].mxu0
    %v380 = vpop.f32.mrb[0].mxu0
    %v381 = vadd.f32 0.0, %v380
    %v382 = vpop.f32.mrb[0].mxu0
    %383 = vdwg.mxu0
    %v384 = vand.u32 2147483647, %v209
    %v385 = vand.u32 2147483647, %v213
    %v386 = vand.u32 2147483647, %v219
    %v387 = vand.u32 2147483647, %v223
    %v388 = vand.u32 2147483647, %v229
    %v389 = vand.u32 2147483647, %v233
    %v390 = vand.u32 2147483647, %v239
    %v391 = vand.u32 2147483647, %v243
    %v392 = vand.u32 2147483647, %v249
    %v393 = vand.u32 2147483647, %v253
    %v394 = vand.u32 2147483647, %v259
    %v395 = vand.u32 2147483647, %v263
    %v396 = vand.u32 2147483647, %v269
    %v397 = vand.u32 2147483647, %v273
    %v398 = vand.u32 2147483647, %v279
    %v399 = vand.u32 2147483647, %v283
    %v400 = vmul.f32 %v384, %v211
    %v401 = vmul.f32 %v385, %v215
    %v402 = vmul.f32 %v386, %v221
    %v403 = vmul.f32 %v387, %v225
    %v404 = vmul.f32 %v388, %v231
    %v405 = vmul.f32 %v389, %v235
    %v406 = vmul.f32 %v390, %v241
    %v407 = vmul.f32 %v391, %v245
    %v408 = vmul.f32 %v392, %v251
    %v409 = vmul.f32 %v393, %v255
    %v410 = vmul.f32 %v394, %v261
    %v411 = vmul.f32 %v395, %v265
    %v412 = vmul.f32 %v396, %v271
    %v413 = vmul.f32 %v397, %v275
    %v414 = vmul.f32 %v398, %v281
    %v415 = vmul.f32 %v399, %v285
    %416 = vxpose.xlu0.b32.start [1/16] %v400, 128
    %417 = vxpose.xlu0.b32.cont [2/16] %v401, 128
    %418 = vxpose.xlu0.b32.cont [3/16] %v402, 128
    %419 = vxpose.xlu0.b32.cont [4/16] %v403, 128
    %420 = vxpose.xlu0.b32.cont [5/16] %v404, 128
    %421 = vxpose.xlu0.b32.cont [6/16] %v405, 128
    %422 = vxpose.xlu0.b32.cont [7/16] %v406, 128
    %423 = vxpose.xlu0.b32.cont [8/16] %v407, 128
    %424 = vxpose.xlu0.b32.cont [9/16] %v408, 128
    %425 = vxpose.xlu0.b32.cont [10/16] %v409, 128
    %426 = vxpose.xlu0.b32.cont [11/16] %v410, 128
    %427 = vxpose.xlu0.b32.cont [12/16] %v411, 128
    %428 = vxpose.xlu0.b32.cont [13/16] %v412, 128
    %429 = vxpose.xlu0.b32.cont [14/16] %v413, 128
    %430 = vxpose.xlu0.b32.cont [15/16] %v414, 128
    %431 = vxpose.xlu0.b32.end [16/16] %v415, 128
    %v432 = vpop.trf.xlu0
    %v433 = vpop.trf.xlu0
    %v434 = vpop.trf.xlu0
    %v435 = vpop.trf.xlu0
    %v436 = vpop.trf.xlu0
    %v437 = vpop.trf.xlu0
    %v438 = vpop.trf.xlu0
    %v439 = vpop.trf.xlu0
    %v440 = vpop.trf.xlu0
    %v441 = vpop.trf.xlu0
    %v442 = vpop.trf.xlu0
    %v443 = vpop.trf.xlu0
    %v444 = vpop.trf.xlu0
    %v445 = vpop.trf.xlu0
    %v446 = vpop.trf.xlu0
    %v447 = vpop.trf.xlu0
    %448 = vxpose.xlu0.b32.start [1/16] %v322, 128
    %449 = vxpose.xlu0.b32.cont [2/16] %v325, 128
    %450 = vxpose.xlu0.b32.cont [3/16] %v330, 128
    %451 = vxpose.xlu0.b32.cont [4/16] %v333, 128
    %452 = vxpose.xlu0.b32.cont [5/16] %v338, 128
    %453 = vxpose.xlu0.b32.cont [6/16] %v341, 128
    %454 = vxpose.xlu0.b32.cont [7/16] %v346, 128
    %455 = vxpose.xlu0.b32.cont [8/16] %v349, 128
    %456 = vxpose.xlu0.b32.cont [9/16] %v354, 128
    %457 = vxpose.xlu0.b32.cont [10/16] %v357, 128
    %458 = vxpose.xlu0.b32.cont [11/16] %v362, 128
    %459 = vxpose.xlu0.b32.cont [12/16] %v365, 128
    %460 = vxpose.xlu0.b32.cont [13/16] %v370, 128
    %461 = vxpose.xlu0.b32.cont [14/16] %v373, 128
    %462 = vxpose.xlu0.b32.cont [15/16] %v378, 128
    %463 = vxpose.xlu0.b32.end [16/16] %v381, 128
    %v464 = vpop.trf.xlu0
    %v465 = vpop.trf.xlu0
    %v466 = vpop.trf.xlu0
    %v467 = vpop.trf.xlu0
    %v468 = vpop.trf.xlu0
    %v469 = vpop.trf.xlu0
    %v470 = vpop.trf.xlu0
    %v471 = vpop.trf.xlu0
    %v472 = vpop.trf.xlu0
    %v473 = vpop.trf.xlu0
    %v474 = vpop.trf.xlu0
    %v475 = vpop.trf.xlu0
    %v476 = vpop.trf.xlu0
    %v477 = vpop.trf.xlu0
    %v478 = vpop.trf.xlu0
    %v479 = vpop.trf.xlu0
    %v480 = vadd.f32 %v464, %v432
    %v481 = vadd.f32 %v465, %v433
    %v482 = vadd.f32 %v466, %v434
    %v483 = vadd.f32 %v467, %v435
    %v484 = vadd.f32 %v480, %v436
    %v485 = vadd.f32 %v481, %v437
    %v486 = vadd.f32 %v482, %v438
    %v487 = vadd.f32 %v483, %v439
    %v488 = vadd.f32 %v484, %v440
    %v489 = vadd.f32 %v485, %v441
    %v490 = vadd.f32 %v486, %v442
    %v491 = vadd.f32 %v487, %v443
    %v492 = vadd.f32 %v488, %v444
    %v493 = vadd.f32 %v489, %v445
    %v494 = vadd.f32 %v490, %v446
    %v495 = vadd.f32 %v491, %v447
    %v496 = vmax.f32 %v492, 0.0
    %v497 = vmax.f32 %v493, 0.0
    %v498 = vmax.f32 %v494, 0.0
    %v499 = vmax.f32 %v495, 0.0
    %v500 = vand.u32 2147483647, %v468
    %v501 = vand.u32 2147483647, %v469
    %v502 = vand.u32 2147483647, %v470
    %v503 = vand.u32 2147483647, %v471
    %v504 = vmax.f32 %v472, 0.0
    %v505 = vmax.f32 %v473, 0.0
    %v506 = vmax.f32 %v474, 0.0
    %v507 = vmax.f32 %v475, 0.0
    %v508 = vmul.f32 %v500, %v496
    %v509 = vmul.f32 %v501, %v497
    %v510 = vmul.f32 %v502, %v498
    %v511 = vmul.f32 %v503, %v499
    %v512 = vld [vmem:[#allocation2] sm:$0xff]
    %v513 = vld [vmem:[#allocation2 + $0x8] sm:$0xff]
    %v514 = vld [vmem:[#allocation2 + $0x10] sm:$0xff]
    %v515 = vld [vmem:[#allocation2 + $0x18] sm:$0xff]
    %v516 = vmul.f32 %v504, %v512
    %v517 = vmul.f32 %v505, %v513
    %v518 = vmul.f32 %v506, %v514
    %v519 = vmul.f32 %v507, %v515
    %v520 = vadd.f32 %v508, %v516
    %v521 = vadd.f32 %v509, %v517
    %v522 = vadd.f32 %v510, %v518
    %v523 = vadd.f32 %v511, %v519
    %v524 = vadd.f32 %v520, %v521
    %v525 = vadd.f32 %v524, %v522
    %v526 = vadd.f32 %v525, %v523
    %v527 = vrot.slane %v526, 4
    %v528 = vadd.f32 %v526, %v527
    %v529 = vrot.slane %v528, 2
    %v530 = vadd.f32 %v528, %v529
    %v531 = vrot.slane %v530, 1
    %v532 = vadd.f32 %v530, %v531
    %v533 = vld [vmem:[%s3] sm:$0x1]
    %v534 = vadd.f32 %v532, %v533
    %535 = vst [vmem:[#allocation5] sm:$0x1] %v534
    // Predicated region
    $region22: #{tpu_custom_call.1} parent=1 // pred_check
      _
    $region23: #{tpu_custom_call.1} parent=1 // pred_check_branch
      %537 = sbr.rel (0) target = $region25
    $region24: #{tpu_custom_call.1} parent=1 // pred_region
      %s539 = ssub.s32 16, 16
      %540 = vsyncadd [#allocation4], %s539
      %s542 = sshll.u32 [#allocation5], 4
      %s543 = int_to_ptr.vmem [resolvable:$true] %s542
      %545 = dma.vmem_to_hbm [thread:$0]  %s543, 16, %s4, [#allocation4]
    $region25: #{tpu_custom_call.1} parent=1 // pred_fallthru
      _
    // Predicated region
    $region26: #{tpu_custom_call.1} parent=1 // pred_check
      _
    $region27: #{tpu_custom_call.1} parent=1 // pred_check_branch
      %547 = sbr.rel (0) target = $region29
    $region28: #{tpu_custom_call.1} parent=1 // pred_region
      %548 = dma.done [#allocation4], 16
    $region29: #{tpu_custom_call.1} parent=1 // pred_fallthru
      _
    %549 = vsyncpa [#allocation3], 1
    %550 = vsyncpa [#allocation4], 1

</llo_original>
